<compile_context>
chip_gen: v7x
topology: tpu7x:2x2x1
jax: 0.10.0
libtpu: 0.0.40
codegen_flags: <defaults>
</compile_context>

<pallas_src>
import math

import jax
import jax.numpy as jnp
from jax import lax
from jax.experimental import pallas as pl
from jax.experimental.pallas import tpu as pltpu


# ---------------------------------------------------------------------------
# Kernel
# ---------------------------------------------------------------------------
def migru_seq_kernel(ic_ref, h0_ref, whh_t_ref, gp_ref, hseq_ref, h_scr):
    """Grid = (batch_blocks ["parallel"], time_blocks ["arbitrary"]).

    One grid step runs TT recurrent time steps on one batch block.
      ic_ref    : (TT, Bb, 3Hp) f32  precomputed x@W_ih^T (streamed)
      h0_ref    : (Bb, Hp)      f32  initial hidden state for this batch block
      whh_t_ref : (Hp, 3Hp)     mm   recurrent weight, whole-array resident in VMEM
      gp_ref    : (5, Bb, 3Hp)  f32  pre-broadcast params: beta_i, alpha_ih, bias_ih,
                                     beta_h, bias_hh
      hseq_ref  : (TT, Bb, Hp)  f32  hidden states for the TT steps (lane-dense)
      h_scr     : (Bb, Hp)      f32  hidden-state carry across time blocks
    """
    t_blk = pl.program_id(1)
    TT = ic_ref.shape[0]
    Hp = h_scr.shape[-1]

    @pl.when(t_blk == 0)
    def _init():
        h_scr[...] = h0_ref[...]

    # Resident params, already broadcast to Bb sublanes (plain VPU loads per step).
    beta_i = gp_ref[0]
    alpha_ih = gp_ref[1]
    bias_ih = gp_ref[2]
    beta_h = gp_ref[3]
    bias_hh = gp_ref[4]
    w_hh = whh_t_ref[...]

    def step(i, h):
        ic = ic_ref[i]                                      # (Bb, 3Hp) f32
        gates_i = beta_i * ic + bias_ih                     # no hx dependence
        alpha_x = alpha_ih * ic
        # Only MXU op left on the serial recurrence path.
        hx_cur = jnp.dot(h.astype(w_hh.dtype), w_hh,
                         preferred_element_type=jnp.float32)  # (Bb, 3Hp)
        gates_h = beta_h * hx_cur + bias_hh
        gates_ih = alpha_x * hx_cur
        # Lane-aligned static slices (Hp is a multiple of 128).
        r = jax.nn.sigmoid(gates_ih[:, :Hp] + gates_i[:, :Hp] + gates_h[:, :Hp])
        u = jax.nn.sigmoid(gates_ih[:, Hp:2 * Hp] + gates_i[:, Hp:2 * Hp]
                           + gates_h[:, Hp:2 * Hp])
        n = jnp.tanh(gates_ih[:, 2 * Hp:] * r + gates_i[:, 2 * Hp:]
                     + r * gates_h[:, 2 * Hp:])
        hy = u * h + (1.0 - u) * n                          # (Bb, Hp) f32
        hseq_ref[i] = hy.astype(hseq_ref.dtype)             # lane-dense (128-mult) store
        return hy

    h_scr[...] = lax.fori_loop(0, TT, step, h_scr[...], unroll=True)


# ---------------------------------------------------------------------------
# Packing helpers (wrapper side)
# ---------------------------------------------------------------------------
def _round_up(n, m):
    return ((n + m - 1) // m) * m


def _pack_weight(w, in_dim, H, Hp, Ip, dtype):
    """w: (3H, in_dim) torch nn layout -> (Ip, 3*Hp); each gate's block at lane
    offset g*Hp, zero-padded, so x_pad @ packed == per-gate x @ W_g.T."""
    w3 = jnp.asarray(w).reshape(3, H, in_dim).astype(dtype)
    w3 = jnp.pad(w3, ((0, 0), (0, Hp - H), (0, Ip - in_dim)))
    return jnp.transpose(w3, (2, 0, 1)).reshape(Ip, 3 * Hp)


def _pack_gate_vector(v, H, Hp, dtype):
    """v: (3H,) -> (3*Hp,) with gate g's H entries at lane offset g*Hp (zero pad)."""
    return jnp.pad(jnp.asarray(v).reshape(3, H).astype(dtype),
                   ((0, 0), (0, Hp - H))).reshape(3 * Hp)


def _vmem_capacity_bytes():
    try:
        info = pltpu.get_tpu_info()
        for attr in ("vmem_capacity_bytes", "vmem_size_bytes", "vmem_bytes"):
            v = getattr(info, attr, None)
            if v:
                return int(v)
    except Exception:
        pass
    return 128 * 1024 * 1024  # v5e/v6e physical; v7x query should succeed above


# ---------------------------------------------------------------------------
# Wrappers
# ---------------------------------------------------------------------------
def migru_sequence_forward(x_seq, hx, params, *,
                           matmul_dtype=jnp.bfloat16,
                           time_block=8,
                           batch_block=128):
    """Run the MIGRU cell over a whole sequence.

    x_seq: (T, B, I) f32, hx: (B, H) f32 -> (T, B, H) f32 (all hidden states).
    The non-recurrent x@W_ih^T projection is done as one batched XLA matmul;
    the Pallas kernel carries the recurrence with W_hh^T resident in VMEM.
    """
    T, B, I = x_seq.shape
    H = hx.shape[-1]
    mm_dtype = jnp.dtype(jnp.float32 if matmul_dtype is None else matmul_dtype)

    sub = 16 if mm_dtype == jnp.dtype(jnp.bfloat16) else 8   # bf16 sublane tile is (16,128)
    Hp = _round_up(H, 128)
    Ip = _round_up(I, 128)
    Bb = min(_round_up(B, sub), _round_up(batch_block, sub))
    Bp = _round_up(_round_up(B, sub), Bb)
    nb = Bp // Bb
    TT = max(1, min(time_block, T))
    Tp = _round_up(T, TT)
    nt = Tp // TT

    # Packed, lane-aligned weights.
    wih_t = _pack_weight(params["weight_ih"], I, H, Hp, Ip, mm_dtype)   # (Ip, 3Hp)
    whh_t = _pack_weight(params["weight_hh"], H, H, Hp, Hp, mm_dtype)   # (Hp, 3Hp)

    # Gate params pre-broadcast to Bb sublanes (avoids per-step XLU broadcasts).
    gp_rows = [_pack_gate_vector(params[k], H, Hp, jnp.float32)
               for k in ("beta_i", "alpha_ih", "bias_ih", "beta_h", "bias_hh")]
    gparams = jnp.stack([jnp.broadcast_to(r[None, :], (Bb, 3 * Hp)) for r in gp_rows])

    # Hoisted input projection: one big MXU matmul over all T*Bp rows (plain XLA).
    x_pad = jnp.pad(x_seq, ((0, Tp - T), (0, Bp - B), (0, Ip - I))).astype(mm_dtype)
    ic = jnp.dot(x_pad.reshape(Tp * Bp, Ip), wih_t,
                 preferred_element_type=jnp.float32).reshape(Tp, Bp, 3 * Hp)
    h0 = jnp.pad(hx.astype(jnp.float32), ((0, Bp - B), (0, Hp - H)))

    # Generation-aware VMEM budget.
    f32b = 4
    mmb = mm_dtype.itemsize
    need = (Hp * 3 * Hp * mmb                 # resident W_hh^T (single copy)
            + 5 * Bb * 3 * Hp * f32b          # resident gate params (single copy)
            + Bb * Hp * f32b                  # hidden-state carry scratch
            + 2 * Bb * Hp * f32b              # h0 block (double-buffered, tiny)
            + 2 * TT * Bb * 3 * Hp * f32b     # streamed input projection (double-buffered)
            + 2 * TT * Bb * Hp * f32b)        # streamed output (double-buffered)
    cap = _vmem_capacity_bytes()
    vmem_limit = int(min(int(0.9 * cap), max(32 * 1024 * 1024, 2 * need)))
    # TODO(synk): if `need` exceeds ~0.9*VMEM (v7x with very large H), additionally
    # tile the 3*Hp gate dimension inside the step.

    cost = pl.CostEstimate(
        flops=2 * Tp * Bp * Hp * 3 * Hp + 16 * Tp * Bp * 3 * Hp,
        transcendentals=3 * Tp * Bp * Hp,
        bytes_accessed=f32b * (Tp * Bp * 3 * Hp + Tp * Bp * Hp + Bp * Hp
                               + 5 * Bb * 3 * Hp) + Hp * 3 * Hp * mmb,
    )

    h_seq = pl.pallas_call(
        migru_seq_kernel,
        out_shape=jax.ShapeDtypeStruct((Tp, Bp, Hp), jnp.float32),
        grid=(nb, nt),
        in_specs=[
            pl.BlockSpec((TT, Bb, 3 * Hp), lambda b, t: (t, b, 0)),   # streamed x@W_ih^T
            pl.BlockSpec((Bb, Hp), lambda b, t: (b, 0)),              # h0 per batch block
            pl.BlockSpec(memory_space=pltpu.MemorySpace.VMEM),        # W_hh^T: resident, 1 buffer
            pl.BlockSpec(memory_space=pltpu.MemorySpace.VMEM),        # gate params: resident
        ],
        out_specs=pl.BlockSpec((TT, Bb, Hp), lambda b, t: (t, b, 0)),
        scratch_shapes=[pltpu.VMEM((Bb, Hp), jnp.float32)],           # recurrent carry
        compiler_params=pltpu.CompilerParams(
            dimension_semantics=("parallel", "arbitrary"),            # batch || , time serial
            vmem_limit_bytes=vmem_limit),
        cost_estimate=cost,
    )(ic, h0, whh_t, gparams)

    return h_seq[:T, :B, :H]


def migru_cell_forward(x, hx, params, *, matmul_dtype=jnp.bfloat16):
    """One-step forward matching MIGRUCell.forward: returns hy[None, ...] (1, B, H)."""
    return migru_sequence_forward(x[None, ...], hx, params, matmul_dtype=matmul_dtype)


# ---------------------------------------------------------------------------
# Parameter init (matches MIGRUCell.__init__) and pure-JAX reference
# ---------------------------------------------------------------------------
def init_migru_params(key, input_size, hidden_size, dtype=jnp.float32):
    r2 = math.sqrt(1.0 / hidden_size)
    r1 = -r2
    k1, k2, k3, k4 = jax.random.split(key, 4)
    return {
        "weight_ih": jax.random.uniform(k1, (3 * hidden_size, input_size),
                                        minval=r1, maxval=r2, dtype=dtype),
        "weight_hh": jax.random.uniform(k2, (3 * hidden_size, hidden_size),
                                        minval=r1, maxval=r2, dtype=dtype),
        "bias_ih": jax.random.uniform(k3, (3 * hidden_size,),
                                      minval=r1, maxval=r2, dtype=dtype) / 100.0,
        "bias_hh": jax.random.uniform(k4, (3 * hidden_size,),
                                      minval=r1, maxval=r2, dtype=dtype) / 100.0,
        "alpha_ih": jnp.zeros((3 * hidden_size,), dtype=dtype),
        "beta_i": jnp.ones((3 * hidden_size,), dtype=dtype),
        "beta_h": jnp.ones((3 * hidden_size,), dtype=dtype),
    }


def migru_cell_reference(x, hx, params):
    input_cur = x @ params["weight_ih"].T
    hx_cur = hx @ params["weight_hh"].T
    gates_i = params["beta_i"] * input_cur + params["bias_ih"]
    gates_h = params["beta_h"] * hx_cur + params["bias_hh"]
    gates_ih = params["alpha_ih"] * input_cur * hx_cur
    ri, ui, ni = jnp.split(gates_i, 3, axis=1)
    rh, uh, nh = jnp.split(gates_h, 3, axis=1)
    rih, uih, nih = jnp.split(gates_ih, 3, axis=1)
    reset_gate = jax.nn.sigmoid(rih + ri + rh)
    update_gate = jax.nn.sigmoid(uih + ui + uh)
    new_gate = jnp.tanh(nih * reset_gate + ni + reset_gate * nh)
    hy = update_gate * hx + (1.0 - update_gate) * new_gate
    return hy[None, ...]


# ---------------------------------------------------------------------------
if __name__ == "__main__":
    batch = 8
    input_size = 16
    hidden_size = 32
    seq_len = 12   # > time_block=8 -> exercises the carry across time blocks + T padding

    key = jax.random.PRNGKey(0)
    kp, kx, kh, ks = jax.random.split(key, 4)

    params = init_migru_params(kp, input_size, hidden_size)
    x = jax.random.normal(kx, (batch, input_size), dtype=jnp.float32)
    hx = jax.random.normal(kh, (batch, hidden_size), dtype=jnp.float32)
    state = (hx,)  # MIGRUCell takes a state tuple; forward uses state[0]

    # --- single-step (module semantics), f32 matmuls -> tight tolerance ---
    hy = jax.block_until_ready(
        migru_cell_forward(x, state[0], params, matmul_dtype=jnp.float32))
    hy_ref = migru_cell_reference(x, state[0], params)
    assert hy.shape == (1, batch, hidden_size)
    assert jnp.allclose(hy, hy_ref, atol=1e-5, rtol=1e-5)

    # --- multi-step reference (pure JAX, step by step) ---
    x_seq = jax.random.normal(ks, (seq_len, batch, input_size), dtype=jnp.float32)
    h = hx
    refs = []
    for t in range(seq_len):
        h = migru_cell_reference(x_seq[t], h, params)[0]
        refs.append(h)
    h_seq_ref = jnp.stack(refs, axis=0)

    # f32 matmul operands: tight tolerance
    h_seq_f32 = jax.block_until_ready(
        migru_sequence_forward(x_seq, hx, params, matmul_dtype=jnp.float32))
    assert h_seq_f32.shape == (seq_len, batch, hidden_size)
    assert jnp.allclose(h_seq_f32, h_seq_ref, atol=1e-4, rtol=1e-4)

    # default bf16 matmul operands (v6e/v7x MXU-native): looser tolerance
    h_seq_bf16 = jax.block_until_ready(migru_sequence_forward(x_seq, hx, params))
    assert h_seq_bf16.shape == (seq_len, batch, hidden_size)
    assert jnp.allclose(h_seq_bf16, h_seq_ref, atol=3e-2, rtol=3e-2)

    print("KERNEL_OK")
</pallas_src>

<mosaic_0001>
module attributes {stable_mosaic.version = 11 : i64} {
  func.func @migru_seq_kernel(%arg0: i32, %arg1: i32, %arg2: memref<1x8x384xf32, #tpu.memory_space<vmem>>, %arg3: memref<8x128xf32, #tpu.memory_space<vmem>>, %arg4: memref<128x384xf32, #tpu.memory_space<vmem>>, %arg5: memref<5x8x384xf32, #tpu.memory_space<vmem>>, %arg6: memref<1x8x128xf32, #tpu.memory_space<vmem>>, %arg7: memref<8x128xf32, #tpu.memory_space<vmem>>) attributes {dimension_semantics = [#tpu.dimension_semantics<parallel>, #tpu.dimension_semantics<arbitrary>], iteration_bounds = array<i64: 1, 1>, scalar_prefetch = 0 : i64, scratch_operands = 1 : i64, tpu.core_type = #tpu.core_type<tc>, window_params = [{transform_indices = @transform_0, window_bounds = array<i64: 1, 8, 384>}, {transform_indices = @transform_1, window_bounds = array<i64: 8, 128>}, {pipeline_mode = #tpu.pipeline_mode<synchronous>, transform_indices = @transform_2, window_bounds = array<i64: 128, 384>}, {pipeline_mode = #tpu.pipeline_mode<synchronous>, transform_indices = @transform_3, window_bounds = array<i64: 5, 8, 384>}, {transform_indices = @transform_4, window_bounds = array<i64: 1, 8, 128>}]} {
    %c0_i32 = arith.constant 0 : i32
    %0 = arith.cmpi eq, %arg1, %c0_i32 : i32
    %1 = arith.extui %0 : i1 to i32
    %c0_i32_0 = arith.constant 0 : i32
    %2 = arith.cmpi ne, %1, %c0_i32_0 : i32
    scf.if %2 {
      %c0_25 = arith.constant 0 : index
      %c0_26 = arith.constant 0 : index
      %63 = vector.load %arg3[%c0_25, %c0_26] : memref<8x128xf32, #tpu.memory_space<vmem>>, vector<8x128xf32>
      %c0_27 = arith.constant 0 : index
      %c0_28 = arith.constant 0 : index
      %64 = vector.load %arg7[%c0_27, %c0_28] : memref<8x128xf32, #tpu.memory_space<vmem>>, vector<8x128xf32>
      tpu.vector_store %arg7[%c0_27, %c0_28], %63 {strides = array<i32>} : memref<8x128xf32, #tpu.memory_space<vmem>>, vector<8x128xf32>,
    } else {
    }
    %c0 = arith.constant 0 : index
    %c0_1 = arith.constant 0 : index
    %c0_2 = arith.constant 0 : index
    %3 = vector.load %arg5[%c0, %c0_1, %c0_2] : memref<5x8x384xf32, #tpu.memory_space<vmem>>, vector<1x8x384xf32>
    %4 = vector.shape_cast %3 : vector<1x8x384xf32> to vector<8x384xf32>
    %c1 = arith.constant 1 : index
    %c0_3 = arith.constant 0 : index
    %c0_4 = arith.constant 0 : index
    %5 = vector.load %arg5[%c1, %c0_3, %c0_4] : memref<5x8x384xf32, #tpu.memory_space<vmem>>, vector<1x8x384xf32>
    %6 = vector.shape_cast %5 : vector<1x8x384xf32> to vector<8x384xf32>
    %c2 = arith.constant 2 : index
    %c0_5 = arith.constant 0 : index
    %c0_6 = arith.constant 0 : index
    %7 = vector.load %arg5[%c2, %c0_5, %c0_6] : memref<5x8x384xf32, #tpu.memory_space<vmem>>, vector<1x8x384xf32>
    %8 = vector.shape_cast %7 : vector<1x8x384xf32> to vector<8x384xf32>
    %c3 = arith.constant 3 : index
    %c0_7 = arith.constant 0 : index
    %c0_8 = arith.constant 0 : index
    %9 = vector.load %arg5[%c3, %c0_7, %c0_8] : memref<5x8x384xf32, #tpu.memory_space<vmem>>, vector<1x8x384xf32>
    %10 = vector.shape_cast %9 : vector<1x8x384xf32> to vector<8x384xf32>
    %c4 = arith.constant 4 : index
    %c0_9 = arith.constant 0 : index
    %c0_10 = arith.constant 0 : index
    %11 = vector.load %arg5[%c4, %c0_9, %c0_10] : memref<5x8x384xf32, #tpu.memory_space<vmem>>, vector<1x8x384xf32>
    %12 = vector.shape_cast %11 : vector<1x8x384xf32> to vector<8x384xf32>
    %c0_11 = arith.constant 0 : index
    %c0_12 = arith.constant 0 : index
    %13 = vector.load %arg4[%c0_11, %c0_12] : memref<128x384xf32, #tpu.memory_space<vmem>>, vector<128x384xf32>
    %c0_13 = arith.constant 0 : index
    %c0_14 = arith.constant 0 : index
    %14 = vector.load %arg7[%c0_13, %c0_14] : memref<8x128xf32, #tpu.memory_space<vmem>>, vector<8x128xf32>
    %c0_i32_15 = arith.constant 0 : i32
    %15 = arith.index_cast %c0_i32_15 : i32 to index
    %c0_16 = arith.constant 0 : index
    %c0_17 = arith.constant 0 : index
    %16 = vector.load %arg2[%15, %c0_16, %c0_17] : memref<1x8x384xf32, #tpu.memory_space<vmem>>, vector<1x8x384xf32>
    %17 = vector.shape_cast %16 : vector<1x8x384xf32> to vector<8x384xf32>
    %18 = arith.mulf %4, %17 : vector<8x384xf32>
    %19 = arith.addf %18, %8 : vector<8x384xf32>
    %20 = arith.mulf %6, %17 : vector<8x384xf32>
    %cst = arith.constant dense<0.000000e+00> : vector<8x384xf32>
    %21 = tpu.matmul %14, %13, %cst {dimension_numbers = #tpu.dot_dimension_numbers<[1], [0], [0], [1], [0, 0, 1, 1], [], []>} : vector<8x128xf32>, vector<128x384xf32>, vector<8x384xf32> -> vector<8x384xf32>
    %22 = arith.mulf %10, %21 : vector<8x384xf32>
    %23 = arith.addf %22, %12 : vector<8x384xf32>
    %24 = arith.mulf %20, %21 : vector<8x384xf32>
    %25 = vector.extract_strided_slice %24 {offsets = [0, 0], sizes = [8, 128], strides = [1, 1]} : vector<8x384xf32> to vector<8x128xf32>
    %26 = vector.extract_strided_slice %19 {offsets = [0, 0], sizes = [8, 128], strides = [1, 1]} : vector<8x384xf32> to vector<8x128xf32>
    %27 = arith.addf %25, %26 : vector<8x128xf32>
    %28 = vector.extract_strided_slice %23 {offsets = [0, 0], sizes = [8, 128], strides = [1, 1]} : vector<8x384xf32> to vector<8x128xf32>
    %29 = arith.addf %27, %28 : vector<8x128xf32>
    %30 = arith.negf %29 : vector<8x128xf32>
    %31 = math.exp %30 : vector<8x128xf32>
    %cst_18 = arith.constant 1.000000e+00 : f32
    %32 = vector.broadcast %cst_18 : f32 to vector<8x128xf32>
    %33 = arith.addf %32, %31 : vector<8x128xf32>
    %34 = arith.divf %32, %33 : vector<8x128xf32>
    %35 = vector.extract_strided_slice %24 {offsets = [0, 128], sizes = [8, 128], strides = [1, 1]} : vector<8x384xf32> to vector<8x128xf32>
    %36 = vector.extract_strided_slice %19 {offsets = [0, 128], sizes = [8, 128], strides = [1, 1]} : vector<8x384xf32> to vector<8x128xf32>
    %37 = arith.addf %35, %36 : vector<8x128xf32>
    %38 = vector.extract_strided_slice %23 {offsets = [0, 128], sizes = [8, 128], strides = [1, 1]} : vector<8x384xf32> to vector<8x128xf32>
    %39 = arith.addf %37, %38 : vector<8x128xf32>
    %40 = arith.negf %39 : vector<8x128xf32>
    %41 = math.exp %40 : vector<8x128xf32>
    %cst_19 = arith.constant 1.000000e+00 : f32
    %42 = vector.broadcast %cst_19 : f32 to vector<8x128xf32>
    %43 = arith.addf %42, %41 : vector<8x128xf32>
    %44 = arith.divf %42, %43 : vector<8x128xf32>
    %45 = vector.extract_strided_slice %24 {offsets = [0, 256], sizes = [8, 128], strides = [1, 1]} : vector<8x384xf32> to vector<8x128xf32>
    %46 = arith.mulf %45, %34 : vector<8x128xf32>
    %47 = vector.extract_strided_slice %19 {offsets = [0, 256], sizes = [8, 128], strides = [1, 1]} : vector<8x384xf32> to vector<8x128xf32>
    %48 = arith.addf %46, %47 : vector<8x128xf32>
    %49 = vector.extract_strided_slice %23 {offsets = [0, 256], sizes = [8, 128], strides = [1, 1]} : vector<8x384xf32> to vector<8x128xf32>
    %50 = arith.mulf %34, %49 : vector<8x128xf32>
    %51 = arith.addf %48, %50 : vector<8x128xf32>
    %52 = math.tanh %51 : vector<8x128xf32>
    %53 = arith.mulf %44, %14 : vector<8x128xf32>
    %cst_20 = arith.constant 1.000000e+00 : f32
    %54 = vector.broadcast %cst_20 : f32 to vector<8x128xf32>
    %55 = arith.subf %54, %44 : vector<8x128xf32>
    %56 = arith.mulf %55, %52 : vector<8x128xf32>
    %57 = arith.addf %53, %56 : vector<8x128xf32>
    %58 = arith.index_cast %c0_i32_15 : i32 to index
    %c0_21 = arith.constant 0 : index
    %c0_22 = arith.constant 0 : index
    %59 = vector.load %arg6[%58, %c0_21, %c0_22] : memref<1x8x128xf32, #tpu.memory_space<vmem>>, vector<1x8x128xf32>
    %60 = vector.shape_cast %59 : vector<1x8x128xf32> to vector<8x128xf32>
    %61 = vector.shape_cast %57 : vector<8x128xf32> to vector<1x8x128xf32>
    tpu.vector_store %arg6[%58, %c0_21, %c0_22], %61 {strides = array<i32>} : memref<1x8x128xf32, #tpu.memory_space<vmem>>, vector<1x8x128xf32>,
    %c1_i32 = arith.constant 1 : i32
    %c0_23 = arith.constant 0 : index
    %c0_24 = arith.constant 0 : index
    %62 = vector.load %arg7[%c0_23, %c0_24] : memref<8x128xf32, #tpu.memory_space<vmem>>, vector<8x128xf32>
    tpu.vector_store %arg7[%c0_23, %c0_24], %57 {strides = array<i32>} : memref<8x128xf32, #tpu.memory_space<vmem>>, vector<8x128xf32>,
    return
  }
  func.func @transform_0(%arg0: i32, %arg1: i32) -> (i32, i32, i32) {
    %c0_i32 = arith.constant 0 : i32
    %c0_i32_0 = arith.constant 0 : i32
    return %arg1, %arg0, %c0_i32 : i32, i32, i32
  }
  func.func @transform_1(%arg0: i32, %arg1: i32) -> (i32, i32) {
    %c0_i32 = arith.constant 0 : i32
    %c0_i32_0 = arith.constant 0 : i32
    return %arg0, %c0_i32 : i32, i32
  }
  func.func @transform_2(%arg0: i32, %arg1: i32) -> (i32, i32) {
    %c0_i32 = arith.constant 0 : i32
    %c0_i32_0 = arith.constant 0 : i32
    %c0_i32_1 = arith.constant 0 : i32
    return %c0_i32, %c0_i32_0 : i32, i32
  }
  func.func @transform_3(%arg0: i32, %arg1: i32) -> (i32, i32, i32) {
    %c0_i32 = arith.constant 0 : i32
    %c0_i32_0 = arith.constant 0 : i32
    %c0_i32_1 = arith.constant 0 : i32
    %c0_i32_2 = arith.constant 0 : i32
    return %c0_i32, %c0_i32_0, %c0_i32_1 : i32, i32, i32
  }
  func.func @transform_4(%arg0: i32, %arg1: i32) -> (i32, i32, i32) {
    %c0_i32 = arith.constant 0 : i32
    %c0_i32_0 = arith.constant 0 : i32
    return %arg1, %arg0, %c0_i32 : i32, i32, i32
  }
}

</mosaic_0001>

<llo_original>
// kernel: tpu_custom_call.1
$region0: #{tpu_custom_call.1}
  #allocation0 [shape = 'u32[]', space=smem, size = 0x4, offset = 0x4, fixed_abs, tag = 'smem constant byte address 0x4 - core index']
  #allocation1 [shape = 'u32[144,128]{1,0:T(1,128)}', space=vmem, size = 0x12000, scoped, tag = 'internal scratch']
  #allocation2 [shape = 'f32[8,128]{1,0:T(8,128)}', space=vmem, size = 0x1000, scoped, tag = 'scratch operand']
  %s0 = inlined_call_operand.hbm [shape: f32[1,8,384], index: 0, kind: input, shape index: {}]
  %s1 = inlined_call_operand.hbm [shape: f32[8,128], index: 1, kind: input, shape index: {}]
  %s2 = inlined_call_operand.hbm [shape: f32[128,384], index: 2, kind: input, shape index: {}]
  %s3 = inlined_call_operand.hbm [shape: f32[5,8,384], index: 3, kind: input, shape index: {}]
  %s4 = inlined_call_operand.hbm [shape: f32[1,8,128], index: 4, kind: output, shape index: {}]
  %s5 = sld [smem:[#allocation0]]
  $region46: #{tpu_custom_call.1} parent=0
    _
  %s7 = ssub.s32 1, %s5
  %s8 = scalar_select 0, %s7, %s5
  $region1: #{tpu_custom_call.1} parent=0
    #allocation3 [shape = 'u8[12288]{0}', space=vmem, size = 0x3000, scoped, tag = 'input window, operand 0, single buffered']
    #allocation4 [shape = 's32[1]{0}', space=sflag, size = 0x4, scoped, tag = 'scoped memory for tpu_custom_call.1']
    #allocation5 [shape = 's32[1]{0}', space=sflag, size = 0x4, scoped, tag = 'scoped memory for tpu_custom_call.1']
    #allocation6 [shape = 'u8[4096]{0}', space=vmem, size = 0x1000, scoped, tag = 'input window, operand 1, single buffered']
    #allocation7 [shape = 's32[1]{0}', space=sflag, size = 0x4, scoped, tag = 'scoped memory for tpu_custom_call.1']
    #allocation8 [shape = 'u8[196608]{0}', space=vmem, size = 0x30000, scoped, tag = 'input window, operand 2, single buffered']
    #allocation9 [shape = 'u8[61440]{0}', space=vmem, size = 0xf000, scoped, tag = 'input window, operand 3, single buffered']
    #allocation10 [shape = 's32[1]{0}', space=sflag, size = 0x4, scoped, tag = 'scoped memory for tpu_custom_call.1']
    #allocation11 [shape = 'u8[4096]{0}', space=vmem, size = 0x1000, scoped, tag = 'output window, operand 0, single buffered']
    %9 = vsyncpa [#allocation4], 0
    %10 = vsyncpa [#allocation7], 0
    %11 = vsyncpa [#allocation10], 0
    %12 = vsyncpa [#allocation5], 0
    // Predicated region
    $region2: #{tpu_custom_call.1} parent=1 // pred_check
      _
    $region3: #{tpu_custom_call.1} parent=1 // pred_check_branch
      %14 = sbr.rel (0) target = $region5
    $region4: #{tpu_custom_call.1} parent=1 // pred_region
      %s16 = ssub.s32 384, 384
      %17 = vsyncadd [#allocation4], %s16
      %s19 = sshll.u32 [#allocation3], 4
      %s20 = int_to_ptr.vmem [resolvable:$true] %s19
      %22 = dma.hbm_to_vmem [thread:$0]  %s0, 384, %s20, [#allocation4]
    $region5: #{tpu_custom_call.1} parent=1 // pred_fallthru
      _
    // Predicated region
    $region6: #{tpu_custom_call.1} parent=1 // pred_check
      _
    $region7: #{tpu_custom_call.1} parent=1 // pred_check_branch
      %24 = sbr.rel (0) target = $region9
    $region8: #{tpu_custom_call.1} parent=1 // pred_region
      %s26 = ssub.s32 128, 128
      %27 = vsyncadd [#allocation7], %s26
      %s29 = sshll.u32 [#allocation6], 4
      %s30 = int_to_ptr.vmem [resolvable:$true] %s29
      %32 = dma.hbm_to_vmem [thread:$0]  %s1, 128, %s30, [#allocation7]
    $region9: #{tpu_custom_call.1} parent=1 // pred_fallthru
      _
    // Predicated region
    $region10: #{tpu_custom_call.1} parent=1 // pred_check
      _
    $region11: #{tpu_custom_call.1} parent=1 // pred_check_branch
      %34 = sbr.rel (0) target = $region13
    $region12: #{tpu_custom_call.1} parent=1 // pred_region
      %s36 = ssub.s32 6144, 6144
      %37 = vsyncadd [#allocation7], %s36
      %s38 = sshll.u32 [#allocation8], 4
      %s39 = int_to_ptr.vmem [resolvable:$true] %s38
      %44 = dma.hbm_to_vmem [thread:$0]  %s2, 6144, %s39, [#allocation7], 384, 384, 24
    $region13: #{tpu_custom_call.1} parent=1 // pred_fallthru
      _
    // Predicated region
    $region14: #{tpu_custom_call.1} parent=1 // pred_check
      _
    $region15: #{tpu_custom_call.1} parent=1 // pred_check_branch
      %46 = sbr.rel (0) target = $region17
    $region16: #{tpu_custom_call.1} parent=1 // pred_region
      %s48 = ssub.s32 1920, 1920
      %49 = vsyncadd [#allocation10], %s48
      %s50 = sshll.u32 [#allocation9], 4
      %s51 = int_to_ptr.vmem [resolvable:$true] %s50
      %56 = dma.hbm_to_vmem [thread:$0]  %s3, 1920, %s51, [#allocation10], 384, 384, 24
    $region17: #{tpu_custom_call.1} parent=1 // pred_fallthru
      _
    // Predicated region
    $region18: #{tpu_custom_call.1} parent=1 // pred_check
      _
    $region19: #{tpu_custom_call.1} parent=1 // pred_check_branch
      %58 = sbr.rel (0) target = $region21
    $region20: #{tpu_custom_call.1} parent=1 // pred_region
      %59 = dma.done [#allocation4], 384
    $region21: #{tpu_custom_call.1} parent=1 // pred_fallthru
      _
    // Predicated region
    $region22: #{tpu_custom_call.1} parent=1 // pred_check
      _
    $region23: #{tpu_custom_call.1} parent=1 // pred_check_branch
      %61 = sbr.rel (0) target = $region25
    $region24: #{tpu_custom_call.1} parent=1 // pred_region
      %62 = dma.done [#allocation7], 128
    $region25: #{tpu_custom_call.1} parent=1 // pred_fallthru
      _
    // Predicated region
    $region26: #{tpu_custom_call.1} parent=1 // pred_check
      _
    $region27: #{tpu_custom_call.1} parent=1 // pred_check_branch
      %64 = sbr.rel (0) target = $region29
    $region28: #{tpu_custom_call.1} parent=1 // pred_region
      %65 = dma.done [#allocation7], 6144
    $region29: #{tpu_custom_call.1} parent=1 // pred_fallthru
      _
    // Predicated region
    $region30: #{tpu_custom_call.1} parent=1 // pred_check
      _
    $region31: #{tpu_custom_call.1} parent=1 // pred_check_branch
      %67 = sbr.rel (0) target = $region33
    $region32: #{tpu_custom_call.1} parent=1 // pred_region
      %68 = dma.done [#allocation10], 1920
    $region33: #{tpu_custom_call.1} parent=1 // pred_fallthru
      _
    %p69 = scmp.eq.s32.totalorder 0, 0
    // Predicated region
    $region34: #{tpu_custom_call.1} parent=1 // pred_check
      %p70 = pneg %p69
    $region35: #{tpu_custom_call.1} parent=1 // pred_check_branch
      %72 = sbr.rel (%p70) target = $region37
    $region36: #{tpu_custom_call.1} parent=1 // pred_region
      %v73 = vld [vmem:[#allocation6] sm:$0xff]
      %74 = vst [vmem:[#allocation2] sm:$0xff] %v73
    $region37: #{tpu_custom_call.1} parent=1 // pred_fallthru
      _
    %v75 = vld [vmem:[#allocation9] sm:$0xff]
    %v76 = vld [vmem:[#allocation9 + $0x8] sm:$0xff]
    %v77 = vld [vmem:[#allocation9 + $0x10] sm:$0xff]
    %s78 = scalar_lea.vmem [#allocation9], 24
    %v79 = vld [vmem:[%s78] sm:$0xff]
    %v80 = vld [vmem:[%s78 + $0x8] sm:$0xff]
    %v81 = vld [vmem:[%s78 + $0x10] sm:$0xff]
    %s82 = scalar_lea.vmem [#allocation9], 48
    %v83 = vld [vmem:[%s82] sm:$0xff]
    %v84 = vld [vmem:[%s82 + $0x8] sm:$0xff]
    %v85 = vld [vmem:[%s82 + $0x10] sm:$0xff]
    %s86 = scalar_lea.vmem [#allocation9], 72
    %v87 = vld [vmem:[%s86] sm:$0xff]
    %v88 = vld [vmem:[%s86 + $0x8] sm:$0xff]
    %v89 = vld [vmem:[%s86 + $0x10] sm:$0xff]
    %s90 = scalar_lea.vmem [#allocation9], 96
    %v91 = vld [vmem:[%s90] sm:$0xff]
    %v92 = vld [vmem:[%s90 + $0x8] sm:$0xff]
    %v93 = vld [vmem:[%s90 + $0x10] sm:$0xff]
    %v94 = vld [vmem:[#allocation8] sm:$0xff]
    %v95 = vld [vmem:[#allocation8 + $0x8] sm:$0xff]
    %v96 = vld [vmem:[#allocation8 + $0x10] sm:$0xff]
    %v97 = vld [vmem:[#allocation8 + $0x18] sm:$0xff]
    %v98 = vld [vmem:[#allocation8 + $0x20] sm:$0xff]
    %v99 = vld [vmem:[#allocation8 + $0x28] sm:$0xff]
    %v100 = vld [vmem:[#allocation8 + $0x30] sm:$0xff]
    %v101 = vld [vmem:[#allocation8 + $0x38] sm:$0xff]
    %v102 = vld [vmem:[#allocation8 + $0x40] sm:$0xff]
    %v103 = vld [vmem:[#allocation8 + $0x48] sm:$0xff]
    %v104 = vld [vmem:[#allocation8 + $0x50] sm:$0xff]
    %v105 = vld [vmem:[#allocation8 + $0x58] sm:$0xff]
    %v106 = vld [vmem:[#allocation8 + $0x60] sm:$0xff]
    %v107 = vld [vmem:[#allocation8 + $0x68] sm:$0xff]
    %v108 = vld [vmem:[#allocation8 + $0x70] sm:$0xff]
    %v109 = vld [vmem:[#allocation8 + $0x78] sm:$0xff]
    %v110 = vld [vmem:[#allocation8 + $0x80] sm:$0xff]
    %v111 = vld [vmem:[#allocation8 + $0x88] sm:$0xff]
    %v112 = vld [vmem:[#allocation8 + $0x90] sm:$0xff]
    %v113 = vld [vmem:[#allocation8 + $0x98] sm:$0xff]
    %v114 = vld [vmem:[#allocation8 + $0xa0] sm:$0xff]
    %v115 = vld [vmem:[#allocation8 + $0xa8] sm:$0xff]
    %v116 = vld [vmem:[#allocation8 + $0xb0] sm:$0xff]
    %v117 = vld [vmem:[#allocation8 + $0xb8] sm:$0xff]
    %v118 = vld [vmem:[#allocation8 + $0xc0] sm:$0xff]
    %v119 = vld [vmem:[#allocation8 + $0xc8] sm:$0xff]
    %v120 = vld [vmem:[#allocation8 + $0xd0] sm:$0xff]
    %v121 = vld [vmem:[#allocation8 + $0xd8] sm:$0xff]
    %v122 = vld [vmem:[#allocation8 + $0xe0] sm:$0xff]
    %v123 = vld [vmem:[#allocation8 + $0xe8] sm:$0xff]
    %v124 = vld [vmem:[#allocation8 + $0xf0] sm:$0xff]
    %v125 = vld [vmem:[#allocation8 + $0xf8] sm:$0xff]
    %v126 = vld [vmem:[#allocation8 + $0x100] sm:$0xff]
    %v127 = vld [vmem:[#allocation8 + $0x108] sm:$0xff]
    %v128 = vld [vmem:[#allocation8 + $0x110] sm:$0xff]
    %v129 = vld [vmem:[#allocation8 + $0x118] sm:$0xff]
    %v130 = vld [vmem:[#allocation8 + $0x120] sm:$0xff]
    %v131 = vld [vmem:[#allocation8 + $0x128] sm:$0xff]
    %v132 = vld [vmem:[#allocation8 + $0x130] sm:$0xff]
    %v133 = vld [vmem:[#allocation8 + $0x138] sm:$0xff]
    %v134 = vld [vmem:[#allocation8 + $0x140] sm:$0xff]
    %v135 = vld [vmem:[#allocation8 + $0x148] sm:$0xff]
    %v136 = vld [vmem:[#allocation8 + $0x150] sm:$0xff]
    %v137 = vld [vmem:[#allocation8 + $0x158] sm:$0xff]
    %v138 = vld [vmem:[#allocation8 + $0x160] sm:$0xff]
    %v139 = vld [vmem:[#allocation8 + $0x168] sm:$0xff]
    %v140 = vld [vmem:[#allocation8 + $0x170] sm:$0xff]
    %v141 = vld [vmem:[#allocation8 + $0x178] sm:$0xff]
    %v142 = vld [vmem:[#allocation2] sm:$0xff]
    %v143 = vld [vmem:[#allocation3] sm:$0xff]
    %v144 = vld [vmem:[#allocation3 + $0x8] sm:$0xff]
    %v145 = vld [vmem:[#allocation3 + $0x10] sm:$0xff]
    %v146 = vmul.f32 %v75, %v143
    %v147 = vmul.f32 %v76, %v144
    %v148 = vmul.f32 %v77, %v145
    %v149 = vadd.f32 %v146, %v83
    %v150 = vadd.f32 %v147, %v84
    %v151 = vadd.f32 %v148, %v85
    %v152 = vmul.f32 %v79, %v143
    %v153 = vmul.f32 %v80, %v144
    %v154 = vmul.f32 %v81, %v145
    %155 = vmatprep.subr.mxu0 %v95
    %156 = vmatpush1.msra.mxu0 %v94
    %157 = vmatprep.subr.mxu0 %v98
    %158 = vmatpush1.msra.mxu0 %v97
    %159 = vmatprep.subr.mxu0 %v101
    %160 = vmatpush1.msra.mxu0 %v100
    %161 = vmatprep.subr.mxu0 %v104
    %162 = vmatpush1.msra.mxu0 %v103
    %163 = vmatprep.subr.mxu0 %v107
    %164 = vmatpush1.msra.mxu0 %v106
    %165 = vmatprep.subr.mxu0 %v110
    %166 = vmatpush1.msra.mxu0 %v109
    %167 = vmatprep.subr.mxu0 %v113
    %168 = vmatpush1.msra.mxu0 %v112
    %169 = vmatprep.subr.mxu0 %v116
    %170 = vmatpush1.msra.mxu0 %v115
    %171 = vmatprep.subr.mxu0 %v119
    %172 = vmatpush1.msra.mxu0 %v118
    %173 = vmatprep.subr.mxu0 %v122
    %174 = vmatpush1.msra.mxu0 %v121
    %175 = vmatprep.subr.mxu0 %v125
    %176 = vmatpush1.msra.mxu0 %v124
    %177 = vmatprep.subr.mxu0 %v128
    %178 = vmatpush1.msra.mxu0 %v127
    %179 = vmatprep.subr.mxu0 %v131
    %180 = vmatpush1.msra.mxu0 %v130
    %181 = vmatprep.subr.mxu0 %v134
    %182 = vmatpush1.msra.mxu0 %v133
    %183 = vmatprep.subr.mxu0 %v137
    %184 = vmatpush1.msra.mxu0 %v136
    %185 = vmatprep.subr.mxu0 %v140
    %186 = vmatpush1.msra.mxu0 %v139
    %187 = vmatprep.subr.mxu0 0.0
    %188 = vmatpush1.msra.mxu0 0.0
    %189 = vmatprep.subr.mxu0 0.0
    %190 = vmatpush1.msra.mxu0 0.0
    %191 = vmatprep.subr.mxu0 0.0
    %192 = vmatpush1.msra.mxu0 0.0
    %193 = vmatprep.subr.mxu0 0.0
    %194 = vmatpush1.msra.mxu0 0.0
    %195 = vmatprep.subr.mxu0 0.0
    %196 = vmatpush1.msra.mxu0 0.0
    %197 = vmatprep.subr.mxu0 0.0
    %198 = vmatpush1.msra.mxu0 0.0
    %199 = vmatprep.subr.mxu0 0.0
    %200 = vmatpush1.msra.mxu0 0.0
    %201 = vmatprep.subr.mxu0 0.0
    %202 = vmatpush1.msra.mxu0 0.0
    %203 = vmatprep.subr.mxu0 0.0
    %204 = vmatpush1.msra.mxu0 0.0
    %205 = vmatprep.subr.mxu0 0.0
    %206 = vmatpush1.msra.mxu0 0.0
    %207 = vmatprep.subr.mxu0 0.0
    %208 = vmatpush1.msra.mxu0 0.0
    %209 = vmatprep.subr.mxu0 0.0
    %210 = vmatpush1.msra.mxu0 0.0
    %211 = vmatprep.subr.mxu0 0.0
    %212 = vmatpush1.msra.mxu0 0.0
    %213 = vmatprep.subr.mxu0 0.0
    %214 = vmatpush1.msra.mxu0 0.0
    %215 = vmatprep.subr.mxu0 0.0
    %216 = vmatpush1.msra.mxu0 0.0
    %217 = vmatprep.subr.mxu0 0.0
    %218 = vmatpush1.msra.mxu0 0.0
    %219 = vmatprep.mubr.f32.mxu0 0.0
    %220 = vmatmul.mubr.f32.gmra.mrb[0].mxu0 %v142
    %v221 = vpop.f32.mrb[0].mxu0
    %v222 = vadd.f32 0.0, %v221
    %v223 = vpop.f32.mrb[0].mxu0
    %v224 = vadd.f32 0.0, %v223
    %225 = vdwg.mxu0
    %226 = vmatprep.subr.mxu0 0.0
    %227 = vmatpush1.msra.mxu0 %v96
    %228 = vmatprep.subr.mxu0 0.0
    %229 = vmatpush1.msra.mxu0 %v99
    %230 = vmatprep.subr.mxu0 0.0
    %231 = vmatpush1.msra.mxu0 %v102
    %232 = vmatprep.subr.mxu0 0.0
    %233 = vmatpush1.msra.mxu0 %v105
    %234 = vmatprep.subr.mxu0 0.0
    %235 = vmatpush1.msra.mxu0 %v108
    %236 = vmatprep.subr.mxu0 0.0
    %237 = vmatpush1.msra.mxu0 %v111
    %238 = vmatprep.subr.mxu0 0.0
    %239 = vmatpush1.msra.mxu0 %v114
    %240 = vmatprep.subr.mxu0 0.0
    %241 = vmatpush1.msra.mxu0 %v117
    %242 = vmatprep.subr.mxu0 0.0
    %243 = vmatpush1.msra.mxu0 %v120
    %244 = vmatprep.subr.mxu0 0.0
    %245 = vmatpush1.msra.mxu0 %v123
    %246 = vmatprep.subr.mxu0 0.0
    %247 = vmatpush1.msra.mxu0 %v126
    %248 = vmatprep.subr.mxu0 0.0
    %249 = vmatpush1.msra.mxu0 %v129
    %250 = vmatprep.subr.mxu0 0.0
    %251 = vmatpush1.msra.mxu0 %v132
    %252 = vmatprep.subr.mxu0 0.0
    %253 = vmatpush1.msra.mxu0 %v135
    %254 = vmatprep.subr.mxu0 0.0
    %255 = vmatpush1.msra.mxu0 %v138
    %256 = vmatprep.subr.mxu0 0.0
    %257 = vmatpush1.msra.mxu0 %v141
    %258 = vmatprep.subr.mxu0 0.0
    %259 = vmatpush1.msra.mxu0 0.0
    %260 = vmatprep.subr.mxu0 0.0
    %261 = vmatpush1.msra.mxu0 0.0
    %262 = vmatprep.subr.mxu0 0.0
    %263 = vmatpush1.msra.mxu0 0.0
    %264 = vmatprep.subr.mxu0 0.0
    %265 = vmatpush1.msra.mxu0 0.0
    %266 = vmatprep.subr.mxu0 0.0
    %267 = vmatpush1.msra.mxu0 0.0
    %268 = vmatprep.subr.mxu0 0.0
    %269 = vmatpush1.msra.mxu0 0.0
    %270 = vmatprep.subr.mxu0 0.0
    %271 = vmatpush1.msra.mxu0 0.0
    %272 = vmatprep.subr.mxu0 0.0
    %273 = vmatpush1.msra.mxu0 0.0
    %274 = vmatprep.subr.mxu0 0.0
    %275 = vmatpush1.msra.mxu0 0.0
    %276 = vmatprep.subr.mxu0 0.0
    %277 = vmatpush1.msra.mxu0 0.0
    %278 = vmatprep.subr.mxu0 0.0
    %279 = vmatpush1.msra.mxu0 0.0
    %280 = vmatprep.subr.mxu0 0.0
    %281 = vmatpush1.msra.mxu0 0.0
    %282 = vmatprep.subr.mxu0 0.0
    %283 = vmatpush1.msra.mxu0 0.0
    %284 = vmatprep.subr.mxu0 0.0
    %285 = vmatpush1.msra.mxu0 0.0
    %286 = vmatprep.subr.mxu0 0.0
    %287 = vmatpush1.msra.mxu0 0.0
    %288 = vmatprep.subr.mxu0 0.0
    %289 = vmatpush1.msra.mxu0 0.0
    %290 = vmatprep.mubr.f32.mxu0 0.0
    %291 = vmatmul.mubr.f32.gmra.mrb[0].mxu0 %v142
    %v292 = vpop.f32.mrb[0].mxu0
    %v293 = vadd.f32 0.0, %v292
    %v294 = vpop.f32.mrb[0].mxu0
    %295 = vdwg.mxu0
    %v296 = vmul.f32 %v87, %v222
    %v297 = vmul.f32 %v88, %v224
    %v298 = vmul.f32 %v89, %v293
    %v299 = vadd.f32 %v296, %v91
    %v300 = vadd.f32 %v297, %v92
    %v301 = vadd.f32 %v298, %v93
    %v302 = vmul.f32 %v152, %v222
    %v303 = vmul.f32 %v153, %v224
    %v304 = vmul.f32 %v154, %v293
    %v305 = vadd.f32 %v302, %v149
    %v306 = vadd.f32 %v305, %v299
    %v307 = vxor.u32 %v306, 2147483648
    %v308 = vmul.f32 %v307, 1.442695
    %v309 = vpow.pop %v308
    %v310 = vadd.f32 %v309, 1.0
    %v311 = vrcp.pop %v310
    %v312 = vmul.f32 1.0, %v311
    %v313 = vadd.f32 %v303, %v150
    %v314 = vadd.f32 %v313, %v300
    %v315 = vxor.u32 %v314, 2147483648
    %v316 = vmul.f32 %v315, 1.442695
    %v317 = vpow.pop %v316
    %v318 = vadd.f32 %v317, 1.0
    %v319 = vrcp.pop %v318
    %v320 = vmul.f32 1.0, %v319
    %v321 = vmul.f32 %v304, %v312
    %v322 = vadd.f32 %v321, %v151
    %v323 = vmul.f32 %v312, %v301
    %v324 = vadd.f32 %v322, %v323
    %v325 = vtanh.pop %v324
    %v326 = vmul.f32 %v320, %v142
    %v327 = vsub.f32 1.0, %v320
    %v328 = vmul.f32 %v327, %v325
    %v329 = vadd.f32 %v326, %v328
    %330 = vst [vmem:[#allocation11] sm:$0xff] %v329
    %331 = vst [vmem:[#allocation2] sm:$0xff] %v329
    // Predicated region
    $region38: #{tpu_custom_call.1} parent=1 // pred_check
      _
    $region39: #{tpu_custom_call.1} parent=1 // pred_check_branch
      %333 = sbr.rel (0) target = $region41
    $region40: #{tpu_custom_call.1} parent=1 // pred_region
      %s335 = ssub.s32 128, 128
      %336 = vsyncadd [#allocation5], %s335
      %s338 = sshll.u32 [#allocation11], 4
      %s339 = int_to_ptr.vmem [resolvable:$true] %s338
      %341 = dma.vmem_to_hbm [thread:$0]  %s339, 128, %s4, [#allocation5]
    $region41: #{tpu_custom_call.1} parent=1 // pred_fallthru
      _
    // Predicated region
    $region42: #{tpu_custom_call.1} parent=1 // pred_check
      _
    $region43: #{tpu_custom_call.1} parent=1 // pred_check_branch
      %343 = sbr.rel (0) target = $region45
    $region44: #{tpu_custom_call.1} parent=1 // pred_region
      %344 = dma.done [#allocation5], 128
    $region45: #{tpu_custom_call.1} parent=1 // pred_fallthru
      _
    %345 = vsyncpa [#allocation4], 1
    %346 = vsyncpa [#allocation7], 1
    %347 = vsyncpa [#allocation10], 1
    %348 = vsyncpa [#allocation5], 1

</llo_original>
